<compile_context>
chip_gen: v6e
topology: v6e:2x2x1
jax: 0.10.0
libtpu: 0.0.40
codegen_flags: <defaults>
</compile_context>

<pallas_src>
import functools

import jax
import jax.numpy as jnp
from jax.experimental import pallas as pl
from jax.experimental.pallas import tpu as pltpu


# ----------------------------------------------------------------------------
# Fused kernel: InstanceNorm1d (over time) + FiLM-style scale/shift modulation
# ----------------------------------------------------------------------------

def _modu_kernel(x_ref, spk_ref, o_ref, *, eps, pack, channels):
    """x_ref : (Bblk, Tp, pack*C)   packed channels-last activations
       spk_ref: (Bblk, 2,  C)       [0]=y_dmn (shift), [1]=y_dsd (scale)
       o_ref : (Bblk, Tp, pack*C)   output (same packed layout)
    """
    x = x_ref[...].astype(jnp.float32)                 # (Bblk, Tp, P*C)
    bblk, tp, _ = x.shape
    p = pack
    c = channels
    inv_t = 1.0 / (tp * p)

    # One-pass stats over time, per (batch, channel).
    s1 = jnp.sum(x, axis=1, keepdims=True)             # (Bblk, 1, P*C)
    s2 = jnp.sum(x * x, axis=1, keepdims=True)         # (Bblk, 1, P*C)
    # Fold the `p` lane groups (each of width C) into one per-channel stat.
    s1 = jnp.sum(s1.reshape(bblk, p, c), axis=1, keepdims=True)   # (Bblk, 1, C)
    s2 = jnp.sum(s2.reshape(bblk, p, c), axis=1, keepdims=True)   # (Bblk, 1, C)

    mean = s1 * inv_t
    var = jnp.maximum(s2 * inv_t - mean * mean, 0.0)   # biased var, clamped >= 0
    inv_std = jax.lax.rsqrt(var + eps)                 # (Bblk, 1, C)

    spk = spk_ref[...].astype(jnp.float32)             # (Bblk, 2, C)
    y_dmn = spk[:, 0:1, :]                             # (Bblk, 1, C)  shift
    y_dsd = spk[:, 1:2, :]                             # (Bblk, 1, C)  scale

    scale = inv_std * y_dsd                            # (Bblk, 1, C)
    shift = y_dmn - mean * scale                       # (Bblk, 1, C)

    # Broadcast the per-channel factors back into the packed-lane layout.
    if p > 1:
        scale = jnp.concatenate([scale] * p, axis=-1)  # (Bblk, 1, P*C)
        shift = jnp.concatenate([shift] * p, axis=-1)

    o_ref[...] = (x * scale + shift).astype(o_ref.dtype)


def modu_unit_pallas(x, spk_emb, *, eps=1e-5, vmem_budget_bytes=8 * 1024 * 1024):
    """x: (B, T, C) channels-last, spk_emb: (B, 1, 2*C)  ->  (B, T, C).

    Equivalent to PyTorch ModuUnit.forward(x, spk_emb); the two PyTorch
    transposes are folded away by staying channels-last end-to-end.
    """
    B, T, C = x.shape
    Bs, Ts, C2 = spk_emb.shape
    assert Bs == B and Ts == 1 and C2 == 2 * C, (x.shape, spk_emb.shape)

    # ---- lane-dense packing: fold `pack` time steps into the lane dim --------
    pack = 1
    if C < 128 and 128 % C == 0 and T % (128 // C) == 0:
        pack = 128 // C
    Tp = T // pack
    PC = C * pack

    x_p = x.reshape(B, Tp, PC)            # free, contiguous view
    spk2 = spk_emb.reshape(B, 2, C)       # free; [0]=y_dmn shift, [1]=y_dsd scale

    # ---- batch blocking -------------------------------------------------------
    # Double-buffered input + output blocks ~ 4 * block bytes; keep under budget,
    # but keep >=2 grid steps when B>=2 so both v7x TensorCores get work.
    itemsize = jnp.dtype(x.dtype).itemsize
    per_b = Tp * PC * itemsize * 4
    cap = max(1, vmem_budget_bytes // max(per_b, 1))
    if B >= 2:
        cap = min(cap, max(1, B // 2))
    bblk = 1
    for d in range(1, B + 1):             # largest divisor of B that fits
        if B % d == 0 and d <= cap:
            bblk = d
    grid = (B // bblk,)

    # TODO(synk): if per_b alone exceeds the scoped-VMEM limit (very long T),
    # a T-tiled stats/apply path is needed; not implemented here.

    kernel = functools.partial(_modu_kernel, eps=eps, pack=pack, channels=C)
    out_p = pl.pallas_call(
        kernel,
        out_shape=jax.ShapeDtypeStruct((B, Tp, PC), x.dtype),
        grid=grid,
        in_specs=[
            pl.BlockSpec((bblk, Tp, PC), lambda g: (g, 0, 0)),
            pl.BlockSpec((bblk, 2, C), lambda g: (g, 0, 0)),
        ],
        out_specs=pl.BlockSpec((bblk, Tp, PC), lambda g: (g, 0, 0)),
        compiler_params=pltpu.CompilerParams(
            dimension_semantics=("parallel",)),
    )(x_p, spk2)

    return out_p.reshape(B, T, C)


# ----------------------------------------------------------------------------
# Pure-JAX reference (mirrors the PyTorch forward) for correctness checking
# ----------------------------------------------------------------------------

def modu_unit_ref(x, spk_emb, eps=1e-5):
    C = x.shape[-1]
    mean = jnp.mean(x, axis=1, keepdims=True)
    var = jnp.mean((x - mean) ** 2, axis=1, keepdims=True)   # biased, like InstanceNorm1d
    xn = (x - mean) * jax.lax.rsqrt(var + eps)
    y_dmn = spk_emb[:, :, :C]                                # shift
    y_dsd = spk_emb[:, :, C:]                                # scale
    return xn * y_dsd + y_dmn


def _check(B, T, C, key):
    k_x, k_s = jax.random.split(key)
    x = jax.random.normal(k_x, (B, T, C), jnp.float32)
    spk = jax.random.normal(k_s, (B, 1, 2 * C), jnp.float32)
    out = jax.block_until_ready(modu_unit_pallas(x, spk))
    ref = modu_unit_ref(x, spk)
    assert out.shape == (B, T, C), out.shape
    assert bool(jnp.all(jnp.isfinite(out)))
    err = float(jnp.max(jnp.abs(out - ref)))
    assert jnp.allclose(out, ref, atol=2e-4, rtol=2e-4), err


if __name__ == "__main__":
    key = jax.random.PRNGKey(0)
    k0, k1, k2 = jax.random.split(key, 3)

    # Main config (ModuUnit default dim=64): lane-packed (pack=2), grid=(2,).
    _check(B=2, T=64, C=64, key=k0)
    # Multi-batch block (Bblk=2) with packing.
    _check(B=4, T=48, C=64, key=k1)
    # Fallback path: C does not divide 128 -> pack=1 (masked-store fallback).
    _check(B=2, T=40, C=80, key=k2)

    print("KERNEL_OK")
</pallas_src>

<mosaic_0001>
module attributes {stable_mosaic.version = 11 : i64} {
  func.func @_modu_kernel(%arg0: i32, %arg1: memref<1x32x128xf32, #tpu.memory_space<vmem>>, %arg2: memref<1x2x64xf32, #tpu.memory_space<vmem>>, %arg3: memref<1x32x128xf32, #tpu.memory_space<vmem>>) attributes {dimension_semantics = [#tpu.dimension_semantics<parallel>], iteration_bounds = array<i64: 2>, scalar_prefetch = 0 : i64, scratch_operands = 0 : i64, tpu.core_type = #tpu.core_type<tc>, window_params = [{transform_indices = @transform_0, window_bounds = array<i64: 1, 32, 128>}, {transform_indices = @transform_1, window_bounds = array<i64: 1, 2, 64>}, {transform_indices = @transform_2, window_bounds = array<i64: 1, 32, 128>}]} {
    %c0 = arith.constant 0 : index
    %c0_0 = arith.constant 0 : index
    %c0_1 = arith.constant 0 : index
    %0 = vector.load %arg1[%c0, %c0_0, %c0_1] : memref<1x32x128xf32, #tpu.memory_space<vmem>>, vector<1x32x128xf32>
    %cst = arith.constant dense<0.000000e+00> : vector<1x128xf32>
    %1 = vector.multi_reduction <add>, %0, %cst [1] : vector<1x32x128xf32> to vector<1x128xf32>
    %2 = vector.shape_cast %1 : vector<1x128xf32> to vector<1x1x128xf32>
    %3 = arith.mulf %0, %0 : vector<1x32x128xf32>
    %cst_2 = arith.constant dense<0.000000e+00> : vector<1x128xf32>
    %4 = vector.multi_reduction <add>, %3, %cst_2 [1] : vector<1x32x128xf32> to vector<1x128xf32>
    %5 = vector.shape_cast %4 : vector<1x128xf32> to vector<1x1x128xf32>
    %6 = vector.shape_cast %2 : vector<1x1x128xf32> to vector<1x2x64xf32>
    %cst_3 = arith.constant dense<0.000000e+00> : vector<1x64xf32>
    %7 = vector.multi_reduction <add>, %6, %cst_3 [1] : vector<1x2x64xf32> to vector<1x64xf32>
    %8 = vector.shape_cast %7 : vector<1x64xf32> to vector<1x1x64xf32>
    %9 = vector.shape_cast %5 : vector<1x1x128xf32> to vector<1x2x64xf32>
    %cst_4 = arith.constant dense<0.000000e+00> : vector<1x64xf32>
    %10 = vector.multi_reduction <add>, %9, %cst_4 [1] : vector<1x2x64xf32> to vector<1x64xf32>
    %11 = vector.shape_cast %10 : vector<1x64xf32> to vector<1x1x64xf32>
    %cst_5 = arith.constant 1.562500e-02 : f32
    %12 = vector.broadcast %cst_5 : f32 to vector<1x1x64xf32>
    %13 = arith.mulf %8, %12 : vector<1x1x64xf32>
    %cst_6 = arith.constant 1.562500e-02 : f32
    %14 = vector.broadcast %cst_6 : f32 to vector<1x1x64xf32>
    %15 = arith.mulf %11, %14 : vector<1x1x64xf32>
    %16 = arith.mulf %13, %13 : vector<1x1x64xf32>
    %17 = arith.subf %15, %16 : vector<1x1x64xf32>
    %cst_7 = arith.constant 0.000000e+00 : f32
    %18 = vector.broadcast %cst_7 : f32 to vector<1x1x64xf32>
    %19 = arith.maximumf %17, %18 : vector<1x1x64xf32>
    %cst_8 = arith.constant 9.99999974E-6 : f32
    %20 = vector.broadcast %cst_8 : f32 to vector<1x1x64xf32>
    %21 = arith.addf %19, %20 : vector<1x1x64xf32>
    %22 = math.rsqrt %21 : vector<1x1x64xf32>
    %c0_9 = arith.constant 0 : index
    %c0_10 = arith.constant 0 : index
    %c0_11 = arith.constant 0 : index
    %23 = vector.load %arg2[%c0_9, %c0_10, %c0_11] : memref<1x2x64xf32, #tpu.memory_space<vmem>>, vector<1x2x64xf32>
    %24 = vector.extract_strided_slice %23 {offsets = [0, 0, 0], sizes = [1, 1, 64], strides = [1, 1, 1]} : vector<1x2x64xf32> to vector<1x1x64xf32>
    %25 = vector.extract_strided_slice %23 {offsets = [0, 1, 0], sizes = [1, 1, 64], strides = [1, 1, 1]} : vector<1x2x64xf32> to vector<1x1x64xf32>
    %26 = arith.mulf %22, %25 : vector<1x1x64xf32>
    %27 = arith.mulf %13, %26 : vector<1x1x64xf32>
    %28 = arith.subf %24, %27 : vector<1x1x64xf32>
    %29 = tpu.concatenate %26, %26 in 2 : vector<1x1x64xf32>, vector<1x1x64xf32> -> vector<1x1x128xf32>
    %30 = tpu.concatenate %28, %28 in 2 : vector<1x1x64xf32>, vector<1x1x64xf32> -> vector<1x1x128xf32>
    %31 = vector.broadcast %29 : vector<1x1x128xf32> to vector<1x32x128xf32>
    %32 = arith.mulf %0, %31 : vector<1x32x128xf32>
    %33 = vector.broadcast %30 : vector<1x1x128xf32> to vector<1x32x128xf32>
    %34 = arith.addf %32, %33 : vector<1x32x128xf32>
    %c0_12 = arith.constant 0 : index
    %c0_13 = arith.constant 0 : index
    %c0_14 = arith.constant 0 : index
    %35 = vector.load %arg3[%c0_12, %c0_13, %c0_14] : memref<1x32x128xf32, #tpu.memory_space<vmem>>, vector<1x32x128xf32>
    tpu.vector_store %arg3[%c0_12, %c0_13, %c0_14], %34 {strides = array<i32>} : memref<1x32x128xf32, #tpu.memory_space<vmem>>, vector<1x32x128xf32>,
    return
  }
  func.func @transform_0(%arg0: i32) -> (i32, i32, i32) {
    %c0_i32 = arith.constant 0 : i32
    %c0_i32_0 = arith.constant 0 : i32
    %c0_i32_1 = arith.constant 0 : i32
    return %arg0, %c0_i32, %c0_i32_0 : i32, i32, i32
  }
  func.func @transform_1(%arg0: i32) -> (i32, i32, i32) {
    %c0_i32 = arith.constant 0 : i32
    %c0_i32_0 = arith.constant 0 : i32
    %c0_i32_1 = arith.constant 0 : i32
    return %arg0, %c0_i32, %c0_i32_0 : i32, i32, i32
  }
  func.func @transform_2(%arg0: i32) -> (i32, i32, i32) {
    %c0_i32 = arith.constant 0 : i32
    %c0_i32_0 = arith.constant 0 : i32
    %c0_i32_1 = arith.constant 0 : i32
    return %arg0, %c0_i32, %c0_i32_0 : i32, i32, i32
  }
}

</mosaic_0001>

<llo_original>
// kernel: tpu_custom_call.1
$region0: #{tpu_custom_call.1}
  #allocation0 [shape = 'u32[]', space=smem, size = 0x4, offset = 0x4, fixed_abs, tag = 'smem constant byte address 0x4 - core index']
  #allocation1 [shape = 'u32[144,128]{1,0:T(1,128)}', space=vmem, size = 0x12000, scoped, tag = 'internal scratch']
  %s0 = inlined_call_operand.hbm [shape: f32[2,32,128], index: 0, kind: input, shape index: {}]
  %s1 = inlined_call_operand.hbm [shape: f32[2,2,64], index: 1, kind: input, shape index: {}]
  %s2 = inlined_call_operand.hbm [shape: f32[2,32,128], index: 2, kind: output, shape index: {}]
  %s3 = sld [smem:[#allocation0]]
  $region49: #{tpu_custom_call.1} parent=0
    _
  %s5 = ssub.s32 1, %s3
  %s6 = scalar_select 0, %s5, %s3
  $region1: #{tpu_custom_call.1} parent=0
    #allocation2 [shape = 'u8[32768]{0}', space=vmem, size = 0x8000, scoped, tag = 'input window, operand 0']
    #allocation3 [shape = 's32[2]{0}', space=sflag, size = 0x8, scoped, tag = 'scoped memory for tpu_custom_call.1']
    #allocation4 [shape = 's32[2]{0}', space=sflag, size = 0x8, scoped, tag = 'scoped memory for tpu_custom_call.1']
    #allocation5 [shape = 'u8[2048]{0}', space=vmem, size = 0x800, scoped, tag = 'input window, operand 1']
    #allocation6 [shape = 's32[2]{0}', space=sflag, size = 0x8, scoped, tag = 'scoped memory for tpu_custom_call.1']
    #allocation7 [shape = 'u8[32768]{0}', space=vmem, size = 0x8000, scoped, tag = 'output window, operand 0']
    %7 = vsyncpa [#allocation3], 0
    %s8 = scalar_lea.sflag [#allocation3], 1
    %9 = vsyncpa %s8, 0
    %10 = vsyncpa [#allocation6], 0
    %s11 = scalar_lea.sflag [#allocation6], 1
    %12 = vsyncpa %s11, 0
    %13 = vsyncpa [#allocation4], 0
    %s14 = scalar_lea.sflag [#allocation4], 1
    %15 = vsyncpa %s14, 0
    loop: start=0, step=1, limit=4
    $region2: #{tpu_custom_call.1} parent=1 // loop_pre_header
      _
    $region3: #{tpu_custom_call.1} parent=1 // loop_header
      %s17 = sphi 0, %s21
      %p18 = scmp.ge.s32.totalorder %s17, 4
      %s27 = sphi 0, %s29
      %s30 = sphi 0, %s27
      %s31 = sphi 0, %s30
      %s47 = sphi 0, %s31
      %s53 = sphi 0, %s55
      %s56 = sphi 0, %s53
      %s57 = sphi 0, %s56
      %s73 = sphi 0, %s57
      %s79 = sphi 0, %s81
      %s82 = sphi 0, %s79
      %s83 = sphi 0, %s82
      %s99 = sphi 0, %s83
    $region4: #{tpu_custom_call.1} parent=1 // loop_header_branch
      %20 = sbr.rel (%p18) target = $region8
    $region5: #{tpu_custom_call.1} parent=1 // loop_body
      %s22 = ssub.s32 %s17, 1
      %s23 = ssub.s32 %s17, 2
      %s24 = sadd.s32 %s17, 1
      %s25 = ssub.s32 %s17, %s24
      %p26 = scmp.eq.s32.totalorder %s25, 0
      %s28 = sadd.s32 %s27, 1
      %s29 = scalar_select %p26, %s27, %s28
      %p32 = pneg %p26
      %p33 = scmp.eq.s32.totalorder %s17, 1
      %p34 = por %p32, %p33
      %p35 = scmp.ne.s32.totalorder %s27, %s30
      %p36 = scmp.eq.s32.totalorder %s17, 0
      %p37 = por %p35, %p36
      %p38 = scmp.ne.s32.totalorder %s27, %s30
      %p39 = scmp.eq.s32.totalorder %s22, 1
      %p40 = por %p38, %p39
      %p41 = scmp.ne.s32.totalorder %s30, %s31
      %p42 = scmp.eq.s32.totalorder %s22, 0
      %p43 = por %p41, %p42
      %p44 = scmp.ne.s32.totalorder %s30, %s31
      %p45 = scmp.eq.s32.totalorder %s23, 1
      %p46 = por %p44, %p45
      %p48 = scmp.ne.s32.totalorder %s31, %s47
      %p49 = scmp.eq.s32.totalorder %s23, 0
      %p50 = por %p48, %p49
      %s51 = ssub.s32 %s17, %s24
      %p52 = scmp.eq.s32.totalorder %s51, 0
      %s54 = sadd.s32 %s53, 1
      %s55 = scalar_select %p52, %s53, %s54
      %p58 = pneg %p52
      %p59 = scmp.eq.s32.totalorder %s17, 1
      %p60 = por %p58, %p59
      %p61 = scmp.ne.s32.totalorder %s53, %s56
      %p62 = scmp.eq.s32.totalorder %s17, 0
      %p63 = por %p61, %p62
      %p64 = scmp.ne.s32.totalorder %s53, %s56
      %p65 = scmp.eq.s32.totalorder %s22, 1
      %p66 = por %p64, %p65
      %p67 = scmp.ne.s32.totalorder %s56, %s57
      %p68 = scmp.eq.s32.totalorder %s22, 0
      %p69 = por %p67, %p68
      %p70 = scmp.ne.s32.totalorder %s56, %s57
      %p71 = scmp.eq.s32.totalorder %s23, 1
      %p72 = por %p70, %p71
      %p74 = scmp.ne.s32.totalorder %s57, %s73
      %p75 = scmp.eq.s32.totalorder %s23, 0
      %p76 = por %p74, %p75
      %s77 = ssub.s32 %s17, %s24
      %p78 = scmp.eq.s32.totalorder %s77, 0
      %s80 = sadd.s32 %s79, 1
      %s81 = scalar_select %p78, %s79, %s80
      %p84 = pneg %p78
      %p85 = scmp.eq.s32.totalorder %s17, 1
      %p86 = por %p84, %p85
      %p87 = scmp.ne.s32.totalorder %s79, %s82
      %p88 = scmp.eq.s32.totalorder %s17, 0
      %p89 = por %p87, %p88
      %p90 = scmp.ne.s32.totalorder %s79, %s82
      %p91 = scmp.eq.s32.totalorder %s22, 1
      %p92 = por %p90, %p91
      %p93 = scmp.ne.s32.totalorder %s82, %s83
      %p94 = scmp.eq.s32.totalorder %s22, 0
      %p95 = por %p93, %p94
      %p96 = scmp.ne.s32.totalorder %s82, %s83
      %p97 = scmp.eq.s32.totalorder %s23, 1
      %p98 = por %p96, %p97
      %p100 = scmp.ne.s32.totalorder %s83, %s99
      %p101 = scmp.eq.s32.totalorder %s23, 0
      %p102 = por %p100, %p101
      %p103 = scmp.le.s32.totalorder 1, %s17
      %p104 = scmp.lt.s32.totalorder %s17, 3
      %p105 = pnand %p103, %p104
      %p106 = pneg %p105
      // Predicated region
      $region9: #{tpu_custom_call.1} parent=5 // pred_check
        _
      $region10: #{tpu_custom_call.1} parent=5 // pred_check_branch
        %108 = sbr.rel (%p105) target = $region12
      $region11: #{tpu_custom_call.1} parent=5 // pred_region
        %s109 = ssub.s32 %s17, 1
      $region12: #{tpu_custom_call.1} parent=5 // pred_fallthru
        _
      %p110 = scmp.lt.s32.totalorder %s17, 2
      // Predicated region
      $region13: #{tpu_custom_call.1} parent=5 // pred_check
        %p111 = pneg %p110
      $region14: #{tpu_custom_call.1} parent=5 // pred_check_branch
        %113 = sbr.rel (%p111) target = $region16
      $region15: #{tpu_custom_call.1} parent=5 // pred_region
        // Predicated region
        $region17: #{tpu_custom_call.1} parent=15 // pred_check
          %p114 = pneg %p37
        $region18: #{tpu_custom_call.1} parent=15 // pred_check_branch
          %116 = sbr.rel (%p114) target = $region20
        $region19: #{tpu_custom_call.1} parent=15 // pred_region
          %s117 = sand.u32 %s27, 1
          %s118 = scalar_lea.sflag [#allocation3], %s117
          %s119 = sand.u32 %s27, 1
          %s120 = smul.addr %s119, 32
          %s121 = scalar_lea.vmem [#allocation2], %s120
          %s123 = ssub.s32 512, 512
          %124 = vsyncadd %s118, %s123
          %s125 = smul.addr %s17, 4
          %s126 = smul.addr %s125, 128
          %s127 = scalar_lea.hbm %s0, %s126
          %s128 = sshll.u32 %s121, 4
          %s129 = int_to_ptr.vmem [resolvable:$true] %s128
          %134 = dma.hbm_to_vmem [thread:$0]  %s127, 512, %s129, %s118, 128, 128, 8
        $region20: #{tpu_custom_call.1} parent=15 // pred_fallthru
          _
        // Predicated region
        $region21: #{tpu_custom_call.1} parent=15 // pred_check
          %p135 = pneg %p63
        $region22: #{tpu_custom_call.1} parent=15 // pred_check_branch
          %137 = sbr.rel (%p135) target = $region24
        $region23: #{tpu_custom_call.1} parent=15 // pred_region
          %s138 = sand.u32 %s53, 1
          %s139 = scalar_lea.sflag [#allocation6], %s138
          %s140 = sand.u32 %s53, 1
          %s141 = smul.addr %s140, 2
          %s142 = scalar_lea.vmem [#allocation5], %s141
          %s144 = ssub.s32 32, 32
          %145 = vsyncadd %s139, %s144
          %s146 = smul.addr %s17, 32
          %s147 = scalar_lea.hbm %s1, %s146
          %s149 = sshll.u32 %s142, 4
          %s150 = int_to_ptr.vmem [resolvable:$true] %s149
          %152 = dma.hbm_to_vmem [thread:$0]  %s147, 32, %s150, %s139
        $region24: #{tpu_custom_call.1} parent=15 // pred_fallthru
          _
      $region16: #{tpu_custom_call.1} parent=5 // pred_fallthru
        _
      %p153 = scmp.le.s32.totalorder 1, %s17
      %p154 = scmp.lt.s32.totalorder %s17, 3
      %p155 = pnand %p153, %p154
      %p156 = pneg %p155
      // Predicated region
      $region25: #{tpu_custom_call.1} parent=5 // pred_check
        _
      $region26: #{tpu_custom_call.1} parent=5 // pred_check_branch
        %158 = sbr.rel (%p155) target = $region28
      $region27: #{tpu_custom_call.1} parent=5 // pred_region
        %s159 = ssub.s32 %s17, 1
        %s160 = sand.u32 %s30, 1
        %s161 = scalar_lea.sflag [#allocation3], %s160
        %s162 = sand.u32 %s30, 1
        %s163 = smul.addr %s162, 32
        %s164 = scalar_lea.vmem [#allocation2], %s163
        // Predicated region
        $region29: #{tpu_custom_call.1} parent=27 // pred_check
          %p165 = pneg %p43
        $region30: #{tpu_custom_call.1} parent=27 // pred_check_branch
          %167 = sbr.rel (%p165) target = $region32
        $region31: #{tpu_custom_call.1} parent=27 // pred_region
          %168 = dma.done %s161, 512
        $region32: #{tpu_custom_call.1} parent=27 // pred_fallthru
          _
        %s169 = sand.u32 %s56, 1
        %s170 = scalar_lea.sflag [#allocation6], %s169
        %s171 = sand.u32 %s56, 1
        %s172 = smul.addr %s171, 2
        %s173 = scalar_lea.vmem [#allocation5], %s172
        // Predicated region
        $region33: #{tpu_custom_call.1} parent=27 // pred_check
          %p174 = pneg %p69
        $region34: #{tpu_custom_call.1} parent=27 // pred_check_branch
          %176 = sbr.rel (%p174) target = $region36
        $region35: #{tpu_custom_call.1} parent=27 // pred_region
          %177 = dma.done %s170, 32
        $region36: #{tpu_custom_call.1} parent=27 // pred_fallthru
          _
        %s178 = sand.u32 %s30, 1
        %s179 = scalar_lea.sflag [#allocation3], %s178
        %s180 = sand.u32 %s30, 1
        %s181 = smul.addr %s180, 32
        %s182 = scalar_lea.vmem [#allocation2], %s181
        %p183 = pneg %p43
        %p184 = pneg %p40
        %s185 = sand.u32 %s56, 1
        %s186 = scalar_lea.sflag [#allocation6], %s185
        %s187 = sand.u32 %s56, 1
        %s188 = smul.addr %s187, 2
        %s189 = scalar_lea.vmem [#allocation5], %s188
        %p190 = pneg %p69
        %p191 = pneg %p66
        %p192 = pneg %p95
        %p193 = pneg %p92
        %s194 = sand.u32 %s82, 1
        %s195 = scalar_lea.sflag [#allocation4], %s194
        %s196 = sand.u32 %s82, 1
        %s197 = smul.addr %s196, 32
        %s198 = scalar_lea.vmem [#allocation7], %s197
        %v199 = vld [vmem:[%s164] sm:$0xff]
        %v200 = vld [vmem:[%s164 + $0x8] sm:$0xff]
        %v201 = vld [vmem:[%s164 + $0x10] sm:$0xff]
        %v202 = vld [vmem:[%s164 + $0x18] sm:$0xff]
        %v203 = vadd.f32 %v199, %v200
        %v204 = vadd.f32 %v203, %v201
        %v205 = vadd.f32 %v204, %v202
        %v206 = vrot.slane %v205, 4
        %v207 = vadd.f32 %v205, %v206
        %v208 = vrot.slane %v207, 2
        %v209 = vadd.f32 %v207, %v208
        %v210 = vrot.slane %v209, 1
        %v211 = vadd.f32 %v209, %v210
        %v212 = vmul.f32 %v199, %v199
        %v213 = vmul.f32 %v200, %v200
        %v214 = vmul.f32 %v201, %v201
        %v215 = vmul.f32 %v202, %v202
        %v216 = vadd.f32 %v212, %v213
        %v217 = vadd.f32 %v216, %v214
        %v218 = vadd.f32 %v217, %v215
        %v219 = vrot.slane %v218, 4
        %v220 = vadd.f32 %v218, %v219
        %v221 = vrot.slane %v220, 2
        %v222 = vadd.f32 %v220, %v221
        %v223 = vrot.slane %v222, 1
        %v224 = vadd.f32 %v222, %v223
        %226 = vrot.lane.b32.xlu0 %v211, 64
        %v227 = vpop.permute.xlu0 %226
        %v229 = vcombine.low %v211, %v227
        %v231 = vunpack.c.l.s4 1934713408
        %v232 = vunpack.c.0.s8 %v231
        %v233 = vlaneseq
        %v234 = vshrl.u32 %v233, 7
        %v235 = vsub.s32 %v232, %v234
        %v236 = vrot.slane %v229, %v235
        %vm237 = vcmask 517120
        %v238 = vsel %vm237, %v236, 0.0
        %v239 = vrot.slane %v238, 4
        %v240 = vadd.f32 %v238, %v239
        %v241 = vrot.slane %v240, 2
        %v242 = vadd.f32 %v240, %v241
        %v243 = vrot.slane %v242, 1
        %v244 = vadd.f32 %v242, %v243
        %246 = vrot.lane.b32.xlu0 %v224, 64
        %v247 = vpop.permute.xlu0 %246
        %v249 = vcombine.low %v224, %v247
        %v251 = vunpack.c.l.s4 1934713408
        %v252 = vunpack.c.0.s8 %v251
        %v253 = vlaneseq
        %v254 = vshrl.u32 %v253, 7
        %v255 = vsub.s32 %v252, %v254
        %v256 = vrot.slane %v249, %v255
        %v257 = vsel %vm237, %v256, 0.0
        %v258 = vrot.slane %v257, 4
        %v259 = vadd.f32 %v257, %v258
        %v260 = vrot.slane %v259, 2
        %v261 = vadd.f32 %v259, %v260
        %v262 = vrot.slane %v261, 1
        %v263 = vadd.f32 %v261, %v262
        %v264 = vmul.f32 %v244, 0.015625
        %v265 = vmul.f32 %v263, 0.015625
        %v266 = vmul.f32 %v264, %v264
        %v267 = vsub.f32 %v265, %v266
        %v268 = vmax.f32 %v267, 0.0
        %v269 = vadd.f32 %v268, 1e-05
        %v270 = vrsqrt.pop %v269
        %v271 = vld [vmem:[%s173] sm:$0x3]
        %v272 = vmul.f32 %v270, %v271
        %v273 = vmul.f32 %v264, %v272
        %v275 = vrot.slane %v273, 1
        %v277 = vsub.f32 %v271, %v275
        %279 = vrot.lane.b32.xlu0 %v272, 64
        %v280 = vpop.permute.xlu0 %279
        %vm282 = vcmask 523264
        %v283 = vsel %vm282, %v272, %v280
        %285 = vrot.lane.b32.xlu0 %v277, 64
        %v286 = vpop.permute.xlu0 %285
        %v288 = vsel %vm282, %v277, %v286
        %v289 = vlaneseq
        %v290 = vshrl.u32 %v289, 7
        %v291 = vsub.s32 1, %v290
        %v292 = vrot.slane %v283, %v291
        %v293 = vmul.f32 %v199, %v292
        %v294 = vmul.f32 %v200, %v292
        %v295 = vmul.f32 %v201, %v292
        %v296 = vmul.f32 %v202, %v292
        %v297 = vlaneseq
        %v298 = vshrl.u32 %v297, 7
        %v299 = vsub.s32 0, %v298
        %v300 = vrot.slane %v288, %v299
        %v301 = vadd.f32 %v293, %v300
        %v302 = vadd.f32 %v294, %v300
        %v303 = vadd.f32 %v295, %v300
        %v304 = vadd.f32 %v296, %v300
        %305 = vst [vmem:[%s198] sm:$0xff] %v301
        %306 = vst [vmem:[%s198 + $0x8] sm:$0xff] %v302
        %307 = vst [vmem:[%s198 + $0x10] sm:$0xff] %v303
        %308 = vst [vmem:[%s198 + $0x18] sm:$0xff] %v304
        %s309 = sand.u32 %s82, 1
        %s310 = scalar_lea.sflag [#allocation4], %s309
        %s311 = sand.u32 %s82, 1
        %s312 = smul.addr %s311, 32
        %s313 = scalar_lea.vmem [#allocation7], %s312
        // Predicated region
        $region37: #{tpu_custom_call.1} parent=27 // pred_check
          %p314 = pneg %p92
        $region38: #{tpu_custom_call.1} parent=27 // pred_check_branch
          %316 = sbr.rel (%p314) target = $region40
        $region39: #{tpu_custom_call.1} parent=27 // pred_region
          %s318 = ssub.s32 512, 512
          %319 = vsyncadd %s310, %s318
          %s320 = smul.addr %s22, 4
          %s321 = smul.addr %s320, 128
          %s322 = scalar_lea.hbm %s2, %s321
          %s323 = sshll.u32 %s313, 4
          %s324 = int_to_ptr.vmem [resolvable:$true] %s323
          %329 = dma.vmem_to_hbm [thread:$0]  %s324, 512, %s322, %s310, 128, 128, 8
        $region40: #{tpu_custom_call.1} parent=27 // pred_fallthru
          _
      $region28: #{tpu_custom_call.1} parent=5 // pred_fallthru
        _
      %p330 = scmp.le.s32.totalorder 2, %s17
      // Predicated region
      $region41: #{tpu_custom_call.1} parent=5 // pred_check
        %p331 = pneg %p330
      $region42: #{tpu_custom_call.1} parent=5 // pred_check_branch
        %333 = sbr.rel (%p331) target = $region44
      $region43: #{tpu_custom_call.1} parent=5 // pred_region
        %s334 = ssub.s32 %s17, 2
        // Predicated region
        $region45: #{tpu_custom_call.1} parent=43 // pred_check
          %p335 = pneg %p98
        $region46: #{tpu_custom_call.1} parent=43 // pred_check_branch
          %337 = sbr.rel (%p335) target = $region48
        $region47: #{tpu_custom_call.1} parent=43 // pred_region
          %s338 = sand.u32 %s83, 1
          %s339 = scalar_lea.sflag [#allocation4], %s338
          %s340 = sand.u32 %s83, 1
          %s341 = smul.addr %s340, 32
          %s342 = scalar_lea.vmem [#allocation7], %s341
          %343 = dma.done %s339, 512
        $region48: #{tpu_custom_call.1} parent=43 // pred_fallthru
          _
      $region44: #{tpu_custom_call.1} parent=5 // pred_fallthru
        _
    $region6: #{tpu_custom_call.1} parent=1 // loop_footer
      %s21 = sadd.s32 1, %s17
    $region7: #{tpu_custom_call.1} parent=1 // loop_footer_branch
      %16 = sbr.rel target = $region3
    $region8: #{tpu_custom_call.1} parent=1 // loop_exit
      _
    %344 = vsyncpa [#allocation3], 1
    %s345 = scalar_lea.sflag [#allocation3], 1
    %346 = vsyncpa %s345, 1
    %347 = vsyncpa [#allocation6], 1
    %s348 = scalar_lea.sflag [#allocation6], 1
    %349 = vsyncpa %s348, 1
    %350 = vsyncpa [#allocation4], 1
    %s351 = scalar_lea.sflag [#allocation4], 1
    %352 = vsyncpa %s351, 1

</llo_original>
